<compile_context>
chip_gen: v5e
topology: v5e:2x2
jax: 0.10.0
libtpu: 0.0.40
codegen_flags: <defaults>
</compile_context>

<pallas_src>
import functools

import jax
import jax.numpy as jnp
from jax.experimental import pallas as pl
from jax.experimental.pallas import tpu as pltpu

F_PAD = 128              # lane-dense feature width shared by every layer
ONES_LANE = F_PAD - 1    # reserved lane carrying a constant 1 (bias folding)


# --------------------------- kernel: small-N path ----------------------------
def _sage_small_kernel(a_ref, inv_ref, w_ref, x_ref, o_ref, *, n_layers):
    """All SAGEConv('mean') layers fused in one block; h stays resident.

    a_ref  : [L, N, N]            bf16 binary adjacency (exact 0/1)
    inv_ref: [L, N, 1]            f32  1/in-degree (deg clamped to >= 1)
    w_ref  : [L, F_PAD, 2*F_PAD]  bf16 [W_self | W_neigh]; bias folded into
                                  row ONES_LANE of the self half
    x_ref  : [N, F_PAD]           f32  features, lane ONES_LANE == 1
    o_ref  : [N, F_PAD]           f32  output (first n_classes lanes valid)
    """
    h = x_ref[...]
    for l in range(n_layers):                         # static unroll, L is small
        hw = jnp.dot(h.astype(jnp.bfloat16), w_ref[l],
                     preferred_element_type=jnp.float32)      # [N, 2*F_PAD]
        h_self = hw[:, :F_PAD]                                # h @ W_self (+bias)
        neigh = jnp.dot(a_ref[l], hw[:, F_PAD:].astype(jnp.bfloat16),
                        preferred_element_type=jnp.float32)   # A @ (h @ W_neigh)
        out = h_self + inv_ref[l] * neigh                     # exact f32 mean scale
        if l != n_layers - 1:
            out = jnp.maximum(out, 0.0)                       # relu; dropout = id
        h = out
    o_ref[...] = h


# ------------------------ kernel: layer-grid, row-tiled -----------------------
def _sage_tiled_kernel(a_ref, inv_ref, w_ref, x_ref, o_ref,
                       h_ref, hws_ref, hwn_ref, *, tm):
    """grid = (L, N_pad // tm); layer axis outer (sequential), row tiles inner.

    Per layer l:
      r == 0 : hw = h @ [W_self|W_neigh] for ALL rows -> scratch
               (self half f32, neighbor half bf16 as the MXU rhs).
      each r : out[tile] = hw_self[tile] + inv[tile] * (A[tile, :] @ hw_neigh)
               h[tile]  <- relu(out[tile])          (input of layer l+1)
    Only the A tile is O(N^2) traffic; its BlockSpec double-buffers the next
    (l, r) tile behind the current MXU work.
    """
    l = pl.program_id(0)
    r = pl.program_id(1)

    @pl.when(jnp.logical_and(l == 0, r == 0))
    def _init_h():
        h_ref[...] = x_ref[...]

    @pl.when(r == 0)
    def _layer_matmul():
        hw = jnp.dot(h_ref[...].astype(jnp.bfloat16), w_ref[...],
                     preferred_element_type=jnp.float32)      # [N_pad, 2*F_PAD]
        hws_ref[...] = hw[:, :F_PAD]
        hwn_ref[...] = hw[:, F_PAD:].astype(jnp.bfloat16)

    row = pl.multiple_of(r * tm, tm)
    neigh = jnp.dot(a_ref[...], hwn_ref[...],
                    preferred_element_type=jnp.float32)       # [tm, F_PAD]
    out = hws_ref[pl.ds(row, tm), :] + inv_ref[...] * neigh
    o_ref[...] = out                     # final layer's write is the survivor
    h_ref[pl.ds(row, tm), :] = jnp.maximum(out, 0.0)   # relu'd input of layer l+1


# ------------------------------ host-side packing -----------------------------
def _pack_inputs(blocks, x, params, n_pad):
    """Layout plumbing: pad to 128 lanes, fold bias via the ones-lane, keep A
    exact binary bf16 and 1/deg in f32."""
    n, in_feats = x.shape
    assert in_feats <= ONES_LANE, "lane 127 is reserved for the bias/ones trick"
    a_list, inv_list, w_list = [], [], []
    for adj in blocks:
        deg = jnp.maximum(adj.sum(axis=1, keepdims=True), 1.0)   # 0-deg -> 0 mean
        a_list.append(jnp.zeros((n_pad, n_pad), jnp.bfloat16)
                      .at[:n, :n].set(adj.astype(jnp.bfloat16)))  # exact 0/1
        inv_list.append(jnp.ones((n_pad, 1), jnp.float32).at[:n].set(1.0 / deg))
    for w_self, w_neigh, bias in params:
        fin, fout = w_self.shape
        assert fin <= ONES_LANE and fout <= ONES_LANE
        wc = jnp.zeros((F_PAD, 2 * F_PAD), jnp.float32)
        wc = wc.at[:fin, :fout].set(w_self)
        wc = wc.at[ONES_LANE, :fout].set(bias.reshape(-1))   # bias rides ones-lane
        wc = wc.at[ONES_LANE, ONES_LANE].set(1.0)            # keep ones-lane == 1
        wc = wc.at[:fin, F_PAD:F_PAD + fout].set(w_neigh)    # fc_neigh (no bias)
        w_list.append(wc.astype(jnp.bfloat16))
    x_pad = jnp.zeros((n_pad, F_PAD), jnp.float32).at[:n, :in_feats].set(x)
    x_pad = x_pad.at[:, ONES_LANE].set(1.0)
    return jnp.stack(a_list), jnp.stack(inv_list), jnp.stack(w_list), x_pad


# ----------------------------------- wrapper ----------------------------------
def sage_forward(blocks, x, params, *, n_classes, row_tile=None):
    """Full SAGE.forward (eval mode) as one pallas_call."""
    n, _ = x.shape
    n_layers = len(params)
    if row_tile is None:
        # Single fused block wins below ~512 nodes (per-step grid overhead
        # ~0.35us and trivial VMEM use); above that, row-tile with tm >= 512.
        row_tile = 0 if n <= 512 else 512

    if row_tile == 0:
        a, inv, w, xp = _pack_inputs(blocks, x, params, n)
        flops = n_layers * (2 * n * F_PAD * 2 * F_PAD + 2 * n * n * F_PAD)
        bytes_acc = (a.size * 2 + w.size * 2 + inv.size * 4 + xp.size * 4
                     + n * F_PAD * 4)
        full = lambda s: pl.BlockSpec(s, lambda: (0,) * len(s))
        out = pl.pallas_call(
            functools.partial(_sage_small_kernel, n_layers=n_layers),
            out_shape=jax.ShapeDtypeStruct((n, F_PAD), jnp.float32),
            in_specs=[full(a.shape), full(inv.shape), full(w.shape), full(xp.shape)],
            out_specs=full((n, F_PAD)),
            cost_estimate=pl.CostEstimate(flops=int(flops), transcendentals=0,
                                          bytes_accessed=int(bytes_acc)),
        )(a, inv, w, xp)
        return out[:, :n_classes]

    tm = row_tile
    assert tm % 8 == 0
    n_pad = pl.cdiv(n, tm) * tm
    a, inv, w, xp = _pack_inputs(blocks, x, params, n_pad)
    n_row_tiles = n_pad // tm
    flops = n_layers * (2 * n_pad * F_PAD * 2 * F_PAD + 2 * n_pad * n_pad * F_PAD)
    bytes_acc = (a.size * 2 + w.size * 2 + inv.size * 4 + xp.size * 4
                 + n_layers * n_pad * F_PAD * 4)
    out = pl.pallas_call(
        functools.partial(_sage_tiled_kernel, tm=tm),
        out_shape=jax.ShapeDtypeStruct((n_pad, F_PAD), jnp.float32),
        grid_spec=pltpu.PrefetchScalarGridSpec(
            num_scalar_prefetch=0,
            grid=(n_layers, n_row_tiles),
            in_specs=[
                pl.BlockSpec((pl.Squeezed(), tm, n_pad), lambda l, r: (l, r, 0)),
                pl.BlockSpec((pl.Squeezed(), tm, 1), lambda l, r: (l, r, 0)),
                pl.BlockSpec((pl.Squeezed(), F_PAD, 2 * F_PAD),
                             lambda l, r: (l, 0, 0)),
                pl.BlockSpec((n_pad, F_PAD), lambda l, r: (0, 0)),
            ],
            out_specs=pl.BlockSpec((tm, F_PAD), lambda l, r: (r, 0)),
            scratch_shapes=[
                pltpu.VMEM((n_pad, F_PAD), jnp.float32),   # h (current layer input)
                pltpu.VMEM((n_pad, F_PAD), jnp.float32),   # h @ W_self (+bias), f32
                pltpu.VMEM((n_pad, F_PAD), jnp.bfloat16),  # h @ W_neigh, MXU rhs
            ],
        ),
        compiler_params=pltpu.CompilerParams(
            # Layer axis is truly sequential; the row axis carries the shared
            # h/hw scratch, so it must stay "arbitrary" too (see v7x TODO above).
            dimension_semantics=("arbitrary", "arbitrary")),
        cost_estimate=pl.CostEstimate(flops=int(flops), transcendentals=0,
                                      bytes_accessed=int(bytes_acc)),
    )(a, inv, w, xp)
    return out[:n, :n_classes]


# ----------------------------- reference & setup ------------------------------
def sage_reference(blocks, x, params):
    """Pure-JAX f32 reference of the same forward pass."""
    h = x
    n_layers = len(params)
    for l, (adj, (w_self, w_neigh, bias)) in enumerate(zip(blocks, params)):
        deg = jnp.maximum(adj.sum(axis=1, keepdims=True), 1.0)
        h_neigh = (adj @ h) / deg
        h = h @ w_self + bias + h_neigh @ w_neigh
        if l != n_layers - 1:
            h = jnp.maximum(h, 0.0)
    return h


def _init_linear(key, fin, fout):
    """nn.Linear-style init; weights stored pre-transposed as [fin, fout]."""
    k_w, k_b = jax.random.split(key)
    bound = 1.0 / jnp.sqrt(jnp.float32(fin))
    w = jax.random.uniform(k_w, (fin, fout), jnp.float32, -bound, bound)
    b = jax.random.uniform(k_b, (1, fout), jnp.float32, -bound, bound)
    return w, b


def build_params(key, in_feats, n_hidden, n_classes, n_layers):
    dims = [in_feats] + [n_hidden] * (n_layers - 1) + [n_classes]
    params = []
    for l in range(n_layers):
        key, k_self, k_neigh = jax.random.split(key, 3)
        w_self, b_self = _init_linear(k_self, dims[l], dims[l + 1])
        w_neigh, _ = _init_linear(k_neigh, dims[l], dims[l + 1])  # fc_neigh: no bias
        params.append((w_self, w_neigh, b_self))
    return params


def build_block(key, n_nodes, edge_prob=0.15):
    """Synthetic graph block: dense BINARY adjacency (row i = in-neighbors)."""
    return (jax.random.uniform(key, (n_nodes, n_nodes)) < edge_prob).astype(jnp.float32)


if __name__ == "__main__":
    # Small shapes consistent with the module: 3-layer GraphSAGE.
    N_NODES, IN_FEATS, N_HIDDEN, N_CLASSES, N_LAYERS = 64, 32, 32, 16, 3

    key = jax.random.PRNGKey(0)
    k_x, k_params, k_g0, k_g1, k_g2 = jax.random.split(key, 5)
    x = jax.random.normal(k_x, (N_NODES, IN_FEATS), jnp.float32)
    params = build_params(k_params, IN_FEATS, N_HIDDEN, N_CLASSES, N_LAYERS)
    blocks = [build_block(k, N_NODES) for k in (k_g0, k_g1, k_g2)]

    ref = sage_reference(blocks, x, params)
    scale = float(jnp.max(jnp.abs(ref)))

    # Path 1: fully fused single block (the right call at this size).
    out_small = jax.block_until_ready(
        sage_forward(blocks, x, params, n_classes=N_CLASSES))
    assert out_small.shape == (N_NODES, N_CLASSES), out_small.shape
    err = float(jnp.max(jnp.abs(out_small - ref)))
    assert err <= 0.05 * scale + 1e-2, ("small-path mismatch", err, scale)

    # Path 2: layer-grid + row-tiled scaling path (tiny tm here only to
    # exercise the pipeline; production threshold uses tm >= 512 for N > 512).
    out_tiled = jax.block_until_ready(
        sage_forward(blocks, x, params, n_classes=N_CLASSES, row_tile=32))
    assert out_tiled.shape == (N_NODES, N_CLASSES), out_tiled.shape
    err = float(jnp.max(jnp.abs(out_tiled - ref)))
    assert err <= 0.05 * scale + 1e-2, ("tiled-path mismatch", err, scale)

    print("KERNEL_OK")
</pallas_src>

<mosaic_0001>
module attributes {stable_mosaic.version = 11 : i64} {
  func.func @_sage_small_kernel(%arg0: memref<3x64x64xbf16, #tpu.memory_space<vmem>>, %arg1: memref<3x64x1xf32, #tpu.memory_space<vmem>>, %arg2: memref<3x128x256xbf16, #tpu.memory_space<vmem>>, %arg3: memref<64x128xf32, #tpu.memory_space<vmem>>, %arg4: memref<64x128xf32, #tpu.memory_space<vmem>>) attributes {dimension_semantics = [], scalar_prefetch = 0 : i64, scratch_operands = 0 : i64, tpu.core_type = #tpu.core_type<tc>} {
    %c0 = arith.constant 0 : index
    %c0_0 = arith.constant 0 : index
    %0 = vector.load %arg3[%c0, %c0_0] : memref<64x128xf32, #tpu.memory_space<vmem>>, vector<64x128xf32>
    %1 = arith.truncf %0 : vector<64x128xf32> to vector<64x128xbf16>
    %c0_1 = arith.constant 0 : index
    %c0_2 = arith.constant 0 : index
    %c0_3 = arith.constant 0 : index
    %2 = vector.load %arg2[%c0_1, %c0_2, %c0_3] : memref<3x128x256xbf16, #tpu.memory_space<vmem>>, vector<1x128x256xbf16>
    %3 = vector.shape_cast %2 : vector<1x128x256xbf16> to vector<128x256xbf16>
    %cst = arith.constant dense<0.000000e+00> : vector<64x256xf32>
    %4 = tpu.matmul %1, %3, %cst {dimension_numbers = #tpu.dot_dimension_numbers<[1], [0], [0], [1], [0, 0, 1, 1], [], []>} : vector<64x128xbf16>, vector<128x256xbf16>, vector<64x256xf32> -> vector<64x256xf32>
    %5 = vector.extract_strided_slice %4 {offsets = [0, 0], sizes = [64, 128], strides = [1, 1]} : vector<64x256xf32> to vector<64x128xf32>
    %c0_4 = arith.constant 0 : index
    %c0_5 = arith.constant 0 : index
    %c0_6 = arith.constant 0 : index
    %6 = vector.load %arg0[%c0_4, %c0_5, %c0_6] : memref<3x64x64xbf16, #tpu.memory_space<vmem>>, vector<1x64x64xbf16>
    %7 = vector.shape_cast %6 : vector<1x64x64xbf16> to vector<64x64xbf16>
    %8 = vector.extract_strided_slice %4 {offsets = [0, 128], sizes = [64, 128], strides = [1, 1]} : vector<64x256xf32> to vector<64x128xf32>
    %9 = arith.truncf %8 : vector<64x128xf32> to vector<64x128xbf16>
    %cst_7 = arith.constant dense<0.000000e+00> : vector<64x128xf32>
    %10 = tpu.matmul %7, %9, %cst_7 {dimension_numbers = #tpu.dot_dimension_numbers<[1], [0], [0], [1], [0, 0, 1, 1], [], []>} : vector<64x64xbf16>, vector<64x128xbf16>, vector<64x128xf32> -> vector<64x128xf32>
    %c0_8 = arith.constant 0 : index
    %c0_9 = arith.constant 0 : index
    %c0_10 = arith.constant 0 : index
    %11 = vector.load %arg1[%c0_8, %c0_9, %c0_10] : memref<3x64x1xf32, #tpu.memory_space<vmem>>, vector<1x64x1xf32>
    %12 = vector.shape_cast %11 : vector<1x64x1xf32> to vector<64x1xf32>
    %13 = vector.broadcast %12 : vector<64x1xf32> to vector<64x128xf32>
    %14 = arith.mulf %13, %10 : vector<64x128xf32>
    %15 = arith.addf %5, %14 : vector<64x128xf32>
    %cst_11 = arith.constant 0.000000e+00 : f32
    %16 = vector.broadcast %cst_11 : f32 to vector<64x128xf32>
    %17 = arith.maximumf %15, %16 : vector<64x128xf32>
    %18 = arith.truncf %17 : vector<64x128xf32> to vector<64x128xbf16>
    %c1 = arith.constant 1 : index
    %c0_12 = arith.constant 0 : index
    %c0_13 = arith.constant 0 : index
    %19 = vector.load %arg2[%c1, %c0_12, %c0_13] : memref<3x128x256xbf16, #tpu.memory_space<vmem>>, vector<1x128x256xbf16>
    %20 = vector.shape_cast %19 : vector<1x128x256xbf16> to vector<128x256xbf16>
    %cst_14 = arith.constant dense<0.000000e+00> : vector<64x256xf32>
    %21 = tpu.matmul %18, %20, %cst_14 {dimension_numbers = #tpu.dot_dimension_numbers<[1], [0], [0], [1], [0, 0, 1, 1], [], []>} : vector<64x128xbf16>, vector<128x256xbf16>, vector<64x256xf32> -> vector<64x256xf32>
    %22 = vector.extract_strided_slice %21 {offsets = [0, 0], sizes = [64, 128], strides = [1, 1]} : vector<64x256xf32> to vector<64x128xf32>
    %c1_15 = arith.constant 1 : index
    %c0_16 = arith.constant 0 : index
    %c0_17 = arith.constant 0 : index
    %23 = vector.load %arg0[%c1_15, %c0_16, %c0_17] : memref<3x64x64xbf16, #tpu.memory_space<vmem>>, vector<1x64x64xbf16>
    %24 = vector.shape_cast %23 : vector<1x64x64xbf16> to vector<64x64xbf16>
    %25 = vector.extract_strided_slice %21 {offsets = [0, 128], sizes = [64, 128], strides = [1, 1]} : vector<64x256xf32> to vector<64x128xf32>
    %26 = arith.truncf %25 : vector<64x128xf32> to vector<64x128xbf16>
    %cst_18 = arith.constant dense<0.000000e+00> : vector<64x128xf32>
    %27 = tpu.matmul %24, %26, %cst_18 {dimension_numbers = #tpu.dot_dimension_numbers<[1], [0], [0], [1], [0, 0, 1, 1], [], []>} : vector<64x64xbf16>, vector<64x128xbf16>, vector<64x128xf32> -> vector<64x128xf32>
    %c1_19 = arith.constant 1 : index
    %c0_20 = arith.constant 0 : index
    %c0_21 = arith.constant 0 : index
    %28 = vector.load %arg1[%c1_19, %c0_20, %c0_21] : memref<3x64x1xf32, #tpu.memory_space<vmem>>, vector<1x64x1xf32>
    %29 = vector.shape_cast %28 : vector<1x64x1xf32> to vector<64x1xf32>
    %30 = vector.broadcast %29 : vector<64x1xf32> to vector<64x128xf32>
    %31 = arith.mulf %30, %27 : vector<64x128xf32>
    %32 = arith.addf %22, %31 : vector<64x128xf32>
    %cst_22 = arith.constant 0.000000e+00 : f32
    %33 = vector.broadcast %cst_22 : f32 to vector<64x128xf32>
    %34 = arith.maximumf %32, %33 : vector<64x128xf32>
    %35 = arith.truncf %34 : vector<64x128xf32> to vector<64x128xbf16>
    %c2 = arith.constant 2 : index
    %c0_23 = arith.constant 0 : index
    %c0_24 = arith.constant 0 : index
    %36 = vector.load %arg2[%c2, %c0_23, %c0_24] : memref<3x128x256xbf16, #tpu.memory_space<vmem>>, vector<1x128x256xbf16>
    %37 = vector.shape_cast %36 : vector<1x128x256xbf16> to vector<128x256xbf16>
    %cst_25 = arith.constant dense<0.000000e+00> : vector<64x256xf32>
    %38 = tpu.matmul %35, %37, %cst_25 {dimension_numbers = #tpu.dot_dimension_numbers<[1], [0], [0], [1], [0, 0, 1, 1], [], []>} : vector<64x128xbf16>, vector<128x256xbf16>, vector<64x256xf32> -> vector<64x256xf32>
    %39 = vector.extract_strided_slice %38 {offsets = [0, 0], sizes = [64, 128], strides = [1, 1]} : vector<64x256xf32> to vector<64x128xf32>
    %c2_26 = arith.constant 2 : index
    %c0_27 = arith.constant 0 : index
    %c0_28 = arith.constant 0 : index
    %40 = vector.load %arg0[%c2_26, %c0_27, %c0_28] : memref<3x64x64xbf16, #tpu.memory_space<vmem>>, vector<1x64x64xbf16>
    %41 = vector.shape_cast %40 : vector<1x64x64xbf16> to vector<64x64xbf16>
    %42 = vector.extract_strided_slice %38 {offsets = [0, 128], sizes = [64, 128], strides = [1, 1]} : vector<64x256xf32> to vector<64x128xf32>
    %43 = arith.truncf %42 : vector<64x128xf32> to vector<64x128xbf16>
    %cst_29 = arith.constant dense<0.000000e+00> : vector<64x128xf32>
    %44 = tpu.matmul %41, %43, %cst_29 {dimension_numbers = #tpu.dot_dimension_numbers<[1], [0], [0], [1], [0, 0, 1, 1], [], []>} : vector<64x64xbf16>, vector<64x128xbf16>, vector<64x128xf32> -> vector<64x128xf32>
    %c2_30 = arith.constant 2 : index
    %c0_31 = arith.constant 0 : index
    %c0_32 = arith.constant 0 : index
    %45 = vector.load %arg1[%c2_30, %c0_31, %c0_32] : memref<3x64x1xf32, #tpu.memory_space<vmem>>, vector<1x64x1xf32>
    %46 = vector.shape_cast %45 : vector<1x64x1xf32> to vector<64x1xf32>
    %47 = vector.broadcast %46 : vector<64x1xf32> to vector<64x128xf32>
    %48 = arith.mulf %47, %44 : vector<64x128xf32>
    %49 = arith.addf %39, %48 : vector<64x128xf32>
    %c0_33 = arith.constant 0 : index
    %c0_34 = arith.constant 0 : index
    %50 = vector.load %arg4[%c0_33, %c0_34] : memref<64x128xf32, #tpu.memory_space<vmem>>, vector<64x128xf32>
    tpu.vector_store %arg4[%c0_33, %c0_34], %49 {strides = array<i32>} : memref<64x128xf32, #tpu.memory_space<vmem>>, vector<64x128xf32>,
    return
  }
}

</mosaic_0001>

<llo_original>
// kernel: tpu_custom_call.1
$region0: #{tpu_custom_call.1}
  #allocation0 [shape = 'u32[]', space=smem, size = 0x4, offset = 0x4, fixed_abs, tag = 'smem constant byte address 0x4 - core index']
  #allocation1 [shape = 'u32[72,128]{1,0:T(1,128)}', space=vmem, size = 0x9000, scoped, tag = 'internal scratch']
  %s0 = inlined_call_operand.vmem [shape: bf16[3,64,64], index: 0, kind: input, shape index: {}]
  %s1 = inlined_call_operand.vmem [shape: f32[3,64,1], index: 1, kind: input, shape index: {}]
  %s2 = inlined_call_operand.hbm [shape: bf16[3,128,256], index: 2, kind: input, shape index: {}]
  %s3 = inlined_call_operand.vmem [shape: f32[64,128], index: 3, kind: input, shape index: {}]
  %s4 = inlined_call_operand.hbm [shape: f32[64,128], index: 4, kind: output, shape index: {}]
  %s5 = sld [smem:[#allocation0]]
  $region30: #{tpu_custom_call.1} parent=0
    _
  %s7 = ssub.s32 1, %s5
  %s8 = scalar_select 0, %s7, %s5
  $region1: #{tpu_custom_call.1} parent=0
    #allocation2 [shape = 'u8[196608]{0}', space=vmem, size = 0x30000, scoped, tag = 'input window, operand 2, single buffered']
    #allocation3 [shape = 's32[1]{0}', space=sflag, size = 0x4, scoped, tag = 'scoped memory for tpu_custom_call.1']
    #allocation4 [shape = 's32[1]{0}', space=sflag, size = 0x4, scoped, tag = 'scoped memory for tpu_custom_call.1']
    #allocation5 [shape = 'u8[32768]{0}', space=vmem, size = 0x8000, scoped, tag = 'output window, operand 0, single buffered']
    %9 = vsyncpa [#allocation3], 0
    %10 = vsyncpa [#allocation4], 0
    // Predicated region
    $region2: #{tpu_custom_call.1} parent=1 // pred_check
      _
    $region3: #{tpu_custom_call.1} parent=1 // pred_check_branch
      %12 = sbr.rel (0) target = $region5
    $region4: #{tpu_custom_call.1} parent=1 // pred_region
      _
    $region5: #{tpu_custom_call.1} parent=1 // pred_fallthru
      _
    // Predicated region
    $region6: #{tpu_custom_call.1} parent=1 // pred_check
      _
    $region7: #{tpu_custom_call.1} parent=1 // pred_check_branch
      %14 = sbr.rel (0) target = $region9
    $region8: #{tpu_custom_call.1} parent=1 // pred_region
      _
    $region9: #{tpu_custom_call.1} parent=1 // pred_fallthru
      _
    // Predicated region
    $region10: #{tpu_custom_call.1} parent=1 // pred_check
      _
    $region11: #{tpu_custom_call.1} parent=1 // pred_check_branch
      %16 = sbr.rel (0) target = $region13
    $region12: #{tpu_custom_call.1} parent=1 // pred_region
      %18 = vsyncadd [#allocation3], 0
      %s19 = sshll.u32 %s2, 4
      %s20 = int_to_ptr.hbm [resolvable:$true] %s19
      %s21 = sshll.u32 [#allocation2], 4
      %s22 = int_to_ptr.vmem [resolvable:$true] %s21
      %27 = dma.hbm_to_vmem [thread:$0]  %s20, 6144, %s22, [#allocation3], 128, 128, 8
    $region13: #{tpu_custom_call.1} parent=1 // pred_fallthru
      _
    // Predicated region
    $region14: #{tpu_custom_call.1} parent=1 // pred_check
      _
    $region15: #{tpu_custom_call.1} parent=1 // pred_check_branch
      %29 = sbr.rel (0) target = $region17
    $region16: #{tpu_custom_call.1} parent=1 // pred_region
      _
    $region17: #{tpu_custom_call.1} parent=1 // pred_fallthru
      _
    // Predicated region
    $region18: #{tpu_custom_call.1} parent=1 // pred_check
      _
    $region19: #{tpu_custom_call.1} parent=1 // pred_check_branch
      %31 = sbr.rel (0) target = $region21
    $region20: #{tpu_custom_call.1} parent=1 // pred_region
      %33 = dma.done [#allocation3], 6144
    $region21: #{tpu_custom_call.1} parent=1 // pred_fallthru
      _
    %v35 = vld [vmem:[%s3] sm:$0xff]
    %v36 = vld [vmem:[%s3 + $0x8] sm:$0xff]
    %v37 = vld [vmem:[%s3 + $0x10] sm:$0xff]
    %v38 = vld [vmem:[%s3 + $0x18] sm:$0xff]
    %v39 = vld [vmem:[%s3 + $0x20] sm:$0xff]
    %v40 = vld [vmem:[%s3 + $0x28] sm:$0xff]
    %v41 = vld [vmem:[%s3 + $0x30] sm:$0xff]
    %v42 = vld [vmem:[%s3 + $0x38] sm:$0xff]
    %v43 = vpack.c.bf16 %v36, %v35
    %v44 = vpack.c.bf16 %v38, %v37
    %v45 = vpack.c.bf16 %v40, %v39
    %v46 = vpack.c.bf16 %v42, %v41
    %v47 = vld [vmem:[#allocation2] sm:$0xff]
    %v48 = vld [vmem:[#allocation2 + $0x8] sm:$0xff]
    %v49 = vld [vmem:[#allocation2 + $0x10] sm:$0xff]
    %v50 = vld [vmem:[#allocation2 + $0x18] sm:$0xff]
    %v51 = vld [vmem:[#allocation2 + $0x20] sm:$0xff]
    %v52 = vld [vmem:[#allocation2 + $0x28] sm:$0xff]
    %v53 = vld [vmem:[#allocation2 + $0x30] sm:$0xff]
    %v54 = vld [vmem:[#allocation2 + $0x38] sm:$0xff]
    %v55 = vld [vmem:[#allocation2 + $0x40] sm:$0xff]
    %v56 = vld [vmem:[#allocation2 + $0x48] sm:$0xff]
    %v57 = vld [vmem:[#allocation2 + $0x50] sm:$0xff]
    %v58 = vld [vmem:[#allocation2 + $0x58] sm:$0xff]
    %v59 = vld [vmem:[#allocation2 + $0x60] sm:$0xff]
    %v60 = vld [vmem:[#allocation2 + $0x68] sm:$0xff]
    %v61 = vld [vmem:[#allocation2 + $0x70] sm:$0xff]
    %v62 = vld [vmem:[#allocation2 + $0x78] sm:$0xff]
    %v79 = vunpack.c.l.b16 %v47
    %v80 = vunpack.c.h.b16 %v47
    %v81 = vunpack.c.l.b16 %v48
    %v82 = vunpack.c.h.b16 %v48
    %v83 = vunpack.c.l.b16 %v49
    %v84 = vunpack.c.h.b16 %v49
    %v85 = vunpack.c.l.b16 %v50
    %v86 = vunpack.c.h.b16 %v50
    %v87 = vunpack.c.l.b16 %v51
    %v88 = vunpack.c.h.b16 %v51
    %v89 = vunpack.c.l.b16 %v52
    %v90 = vunpack.c.h.b16 %v52
    %v91 = vunpack.c.l.b16 %v53
    %v92 = vunpack.c.h.b16 %v53
    %v93 = vunpack.c.l.b16 %v54
    %v94 = vunpack.c.h.b16 %v54
    %v95 = vunpack.c.l.b16 %v55
    %v96 = vunpack.c.h.b16 %v55
    %v97 = vunpack.c.l.b16 %v56
    %v98 = vunpack.c.h.b16 %v56
    %v99 = vunpack.c.l.b16 %v57
    %v100 = vunpack.c.h.b16 %v57
    %v101 = vunpack.c.l.b16 %v58
    %v102 = vunpack.c.h.b16 %v58
    %v103 = vunpack.c.l.b16 %v59
    %v104 = vunpack.c.h.b16 %v59
    %v105 = vunpack.c.l.b16 %v60
    %v106 = vunpack.c.h.b16 %v60
    %v107 = vunpack.c.l.b16 %v61
    %v108 = vunpack.c.h.b16 %v61
    %v109 = vunpack.c.l.b16 %v62
    %v110 = vunpack.c.h.b16 %v62
    %v111 = vpack.c.b16 %v81, %v79
    %v112 = vpack.c.b16 %v82, %v80
    %v113 = vpack.c.b16 %v85, %v83
    %v114 = vpack.c.b16 %v86, %v84
    %v115 = vpack.c.b16 %v89, %v87
    %v116 = vpack.c.b16 %v90, %v88
    %v117 = vpack.c.b16 %v93, %v91
    %v118 = vpack.c.b16 %v94, %v92
    %v119 = vpack.c.b16 %v97, %v95
    %v120 = vpack.c.b16 %v98, %v96
    %v121 = vpack.c.b16 %v101, %v99
    %v122 = vpack.c.b16 %v102, %v100
    %v123 = vpack.c.b16 %v105, %v103
    %v124 = vpack.c.b16 %v106, %v104
    %v125 = vpack.c.b16 %v109, %v107
    %v126 = vpack.c.b16 %v110, %v108
    %143 = vmatpush.bf16.msra.mxu0 %v125
    %144 = vmatpush.bf16.msra.mxu0 %v123
    %145 = vmatpush.bf16.msra.mxu0 %v121
    %146 = vmatpush.bf16.msra.mxu0 %v119
    %147 = vmatpush.bf16.msra.mxu0 %v117
    %148 = vmatpush.bf16.msra.mxu0 %v115
    %149 = vmatpush.bf16.msra.mxu0 %v113
    %150 = vmatpush.bf16.msra.mxu0 %v111
    %151 = vmatmul.bf16.gmra.mxu0 %v43
    %v152 = vpop.f32.mrf.mxu0
    %v153 = vadd.f32 0.0, %v152
    %v154 = vpop.f32.mrf.mxu0
    %v155 = vadd.f32 0.0, %v154
    %156 = vmatmul.bf16.gmra.mxu0 %v44
    %v157 = vpop.f32.mrf.mxu0
    %v158 = vadd.f32 0.0, %v157
    %v159 = vpop.f32.mrf.mxu0
    %v160 = vadd.f32 0.0, %v159
    %161 = vmatmul.bf16.gmra.mxu0 %v45
    %v162 = vpop.f32.mrf.mxu0
    %v163 = vadd.f32 0.0, %v162
    %v164 = vpop.f32.mrf.mxu0
    %v165 = vadd.f32 0.0, %v164
    %166 = vmatmul.bf16.gmra.mxu0 %v46
    %v167 = vpop.f32.mrf.mxu0
    %v168 = vadd.f32 0.0, %v167
    %v169 = vpop.f32.mrf.mxu0
    %v170 = vadd.f32 0.0, %v169
    %171 = vdwg.mxu0
    %172 = vmatpush.bf16.msra.mxu0 %v126
    %173 = vmatpush.bf16.msra.mxu0 %v124
    %174 = vmatpush.bf16.msra.mxu0 %v122
    %175 = vmatpush.bf16.msra.mxu0 %v120
    %176 = vmatpush.bf16.msra.mxu0 %v118
    %177 = vmatpush.bf16.msra.mxu0 %v116
    %178 = vmatpush.bf16.msra.mxu0 %v114
    %179 = vmatpush.bf16.msra.mxu0 %v112
    %180 = vmatmul.bf16.gmra.mxu0 %v43
    %v181 = vpop.f32.mrf.mxu0
    %v182 = vadd.f32 0.0, %v181
    %v183 = vpop.f32.mrf.mxu0
    %v184 = vadd.f32 0.0, %v183
    %185 = vmatmul.bf16.gmra.mxu0 %v44
    %v186 = vpop.f32.mrf.mxu0
    %v187 = vadd.f32 0.0, %v186
    %v188 = vpop.f32.mrf.mxu0
    %v189 = vadd.f32 0.0, %v188
    %190 = vmatmul.bf16.gmra.mxu0 %v45
    %v191 = vpop.f32.mrf.mxu0
    %v192 = vadd.f32 0.0, %v191
    %v193 = vpop.f32.mrf.mxu0
    %v194 = vadd.f32 0.0, %v193
    %195 = vmatmul.bf16.gmra.mxu0 %v46
    %v196 = vpop.f32.mrf.mxu0
    %v197 = vadd.f32 0.0, %v196
    %v198 = vpop.f32.mrf.mxu0
    %v199 = vadd.f32 0.0, %v198
    %200 = vdwg.mxu0
    %v201 = vld [vmem:[%s0] sm:$0xf]
    %v202 = vld [vmem:[%s0 + $0x4] sm:$0xf]
    %v203 = vld [vmem:[%s0 + $0x8] sm:$0xf]
    %v204 = vld [vmem:[%s0 + $0xc] sm:$0xf]
    %v205 = vld [vmem:[%s0 + $0x10] sm:$0xf]
    %v206 = vld [vmem:[%s0 + $0x14] sm:$0xf]
    %v207 = vld [vmem:[%s0 + $0x18] sm:$0xf]
    %v208 = vld [vmem:[%s0 + $0x1c] sm:$0xf]
    %v209 = vpack.c.bf16 %v184, %v182
    %v210 = vpack.c.bf16 %v189, %v187
    %v211 = vpack.c.bf16 %v194, %v192
    %v212 = vpack.c.bf16 %v199, %v197
    %v221 = vunpack.c.l.b16 %v201
    %v222 = vunpack.c.l.b16 %v202
    %v223 = vunpack.c.l.b16 %v203
    %v224 = vunpack.c.l.b16 %v204
    %v225 = vunpack.c.l.b16 %v205
    %v226 = vunpack.c.l.b16 %v206
    %v227 = vunpack.c.l.b16 %v207
    %v228 = vunpack.c.l.b16 %v208
    %v229 = vpack.c.b16 %v222, %v221
    %v230 = vpack.c.b16 %v224, %v223
    %v231 = vpack.c.b16 %v226, %v225
    %v232 = vpack.c.b16 %v228, %v227
    %vm233 = vcmask 523264
    %v235 = vsel %vm233, %v229, 0
    %v238 = vsel %vm233, %v230, 0
    %v241 = vsel %vm233, %v231, 0
    %v244 = vsel %vm233, %v232, 0
    %246 = vmatpush.bf16.msra.mxu0 0
    %247 = vmatpush.bf16.msra.mxu0 0
    %248 = vmatpush.bf16.msra.mxu0 0
    %249 = vmatpush.bf16.msra.mxu0 0
    %250 = vmatpush.bf16.msra.mxu0 %v212
    %251 = vmatpush.bf16.msra.mxu0 %v211
    %252 = vmatpush.bf16.msra.mxu0 %v210
    %253 = vmatpush.bf16.msra.mxu0 %v209
    %254 = vmatmul.bf16.gmra.mxu0 %v235
    %v255 = vpop.f32.mrf.mxu0
    %v256 = vadd.f32 0.0, %v255
    %v257 = vpop.f32.mrf.mxu0
    %v258 = vadd.f32 0.0, %v257
    %259 = vmatmul.bf16.gmra.mxu0 %v238
    %v260 = vpop.f32.mrf.mxu0
    %v261 = vadd.f32 0.0, %v260
    %v262 = vpop.f32.mrf.mxu0
    %v263 = vadd.f32 0.0, %v262
    %264 = vmatmul.bf16.gmra.mxu0 %v241
    %v265 = vpop.f32.mrf.mxu0
    %v266 = vadd.f32 0.0, %v265
    %v267 = vpop.f32.mrf.mxu0
    %v268 = vadd.f32 0.0, %v267
    %269 = vmatmul.bf16.gmra.mxu0 %v244
    %v270 = vpop.f32.mrf.mxu0
    %v271 = vadd.f32 0.0, %v270
    %v272 = vpop.f32.mrf.mxu0
    %v273 = vadd.f32 0.0, %v272
    %274 = vdwg.mxu0
    %v275 = vld [vmem:[%s1] sm:$0xff]
    %v276 = vld [vmem:[%s1 + $0x8] sm:$0xff]
    %v277 = vld [vmem:[%s1 + $0x10] sm:$0xff]
    %v278 = vld [vmem:[%s1 + $0x18] sm:$0xff]
    %v279 = vld [vmem:[%s1 + $0x20] sm:$0xff]
    %v280 = vld [vmem:[%s1 + $0x28] sm:$0xff]
    %v281 = vld [vmem:[%s1 + $0x30] sm:$0xff]
    %v282 = vld [vmem:[%s1 + $0x38] sm:$0xff]
    %284 = vset.pattern.permute.xlu0 0
    %285 = vperm.xlu0 %284, %v275
    %v286 = vpop.permute.xlu0 %285
    %289 = vset.pattern.permute.xlu0 0
    %290 = vperm.xlu0 %289, %v276
    %v291 = vpop.permute.xlu0 %290
    %294 = vset.pattern.permute.xlu0 0
    %295 = vperm.xlu0 %294, %v277
    %v296 = vpop.permute.xlu0 %295
    %299 = vset.pattern.permute.xlu0 0
    %300 = vperm.xlu0 %299, %v278
    %v301 = vpop.permute.xlu0 %300
    %304 = vset.pattern.permute.xlu0 0
    %305 = vperm.xlu0 %304, %v279
    %v306 = vpop.permute.xlu0 %305
    %309 = vset.pattern.permute.xlu0 0
    %310 = vperm.xlu0 %309, %v280
    %v311 = vpop.permute.xlu0 %310
    %314 = vset.pattern.permute.xlu0 0
    %315 = vperm.xlu0 %314, %v281
    %v316 = vpop.permute.xlu0 %315
    %319 = vset.pattern.permute.xlu0 0
    %320 = vperm.xlu0 %319, %v282
    %v321 = vpop.permute.xlu0 %320
    %v323 = vmul.f32 %v286, %v256
    %v324 = vmul.f32 %v291, %v258
    %v325 = vmul.f32 %v296, %v261
    %v326 = vmul.f32 %v301, %v263
    %v327 = vmul.f32 %v306, %v266
    %v328 = vmul.f32 %v311, %v268
    %v329 = vmul.f32 %v316, %v271
    %v330 = vmul.f32 %v321, %v273
    %v331 = vadd.f32 %v153, %v323
    %v332 = vadd.f32 %v155, %v324
    %v333 = vadd.f32 %v158, %v325
    %v334 = vadd.f32 %v160, %v326
    %v335 = vadd.f32 %v163, %v327
    %v336 = vadd.f32 %v165, %v328
    %v337 = vadd.f32 %v168, %v329
    %v338 = vadd.f32 %v170, %v330
    %v339 = vmax.f32 %v331, 0.0
    %v340 = vmax.f32 %v332, 0.0
    %v341 = vmax.f32 %v333, 0.0
    %v342 = vmax.f32 %v334, 0.0
    %v343 = vmax.f32 %v335, 0.0
    %v344 = vmax.f32 %v336, 0.0
    %v345 = vmax.f32 %v337, 0.0
    %v346 = vmax.f32 %v338, 0.0
    %v347 = vpack.c.bf16 %v340, %v339
    %v348 = vpack.c.bf16 %v342, %v341
    %v349 = vpack.c.bf16 %v344, %v343
    %v350 = vpack.c.bf16 %v346, %v345
    %s351 = scalar_lea.vmem [#allocation2], 128
    %v352 = vld [vmem:[%s351] sm:$0xff]
    %v353 = vld [vmem:[%s351 + $0x8] sm:$0xff]
    %v354 = vld [vmem:[%s351 + $0x10] sm:$0xff]
    %v355 = vld [vmem:[%s351 + $0x18] sm:$0xff]
    %v356 = vld [vmem:[%s351 + $0x20] sm:$0xff]
    %v357 = vld [vmem:[%s351 + $0x28] sm:$0xff]
    %v358 = vld [vmem:[%s351 + $0x30] sm:$0xff]
    %v359 = vld [vmem:[%s351 + $0x38] sm:$0xff]
    %v360 = vld [vmem:[%s351 + $0x40] sm:$0xff]
    %v361 = vld [vmem:[%s351 + $0x48] sm:$0xff]
    %v362 = vld [vmem:[%s351 + $0x50] sm:$0xff]
    %v363 = vld [vmem:[%s351 + $0x58] sm:$0xff]
    %v364 = vld [vmem:[%s351 + $0x60] sm:$0xff]
    %v365 = vld [vmem:[%s351 + $0x68] sm:$0xff]
    %v366 = vld [vmem:[%s351 + $0x70] sm:$0xff]
    %v367 = vld [vmem:[%s351 + $0x78] sm:$0xff]
    %v384 = vunpack.c.l.b16 %v352
    %v385 = vunpack.c.h.b16 %v352
    %v386 = vunpack.c.l.b16 %v353
    %v387 = vunpack.c.h.b16 %v353
    %v388 = vunpack.c.l.b16 %v354
    %v389 = vunpack.c.h.b16 %v354
    %v390 = vunpack.c.l.b16 %v355
    %v391 = vunpack.c.h.b16 %v355
    %v392 = vunpack.c.l.b16 %v356
    %v393 = vunpack.c.h.b16 %v356
    %v394 = vunpack.c.l.b16 %v357
    %v395 = vunpack.c.h.b16 %v357
    %v396 = vunpack.c.l.b16 %v358
    %v397 = vunpack.c.h.b16 %v358
    %v398 = vunpack.c.l.b16 %v359
    %v399 = vunpack.c.h.b16 %v359
    %v400 = vunpack.c.l.b16 %v360
    %v401 = vunpack.c.h.b16 %v360
    %v402 = vunpack.c.l.b16 %v361
    %v403 = vunpack.c.h.b16 %v361
    %v404 = vunpack.c.l.b16 %v362
    %v405 = vunpack.c.h.b16 %v362
    %v406 = vunpack.c.l.b16 %v363
    %v407 = vunpack.c.h.b16 %v363
    %v408 = vunpack.c.l.b16 %v364
    %v409 = vunpack.c.h.b16 %v364
    %v410 = vunpack.c.l.b16 %v365
    %v411 = vunpack.c.h.b16 %v365
    %v412 = vunpack.c.l.b16 %v366
    %v413 = vunpack.c.h.b16 %v366
    %v414 = vunpack.c.l.b16 %v367
    %v415 = vunpack.c.h.b16 %v367
    %v416 = vpack.c.b16 %v386, %v384
    %v417 = vpack.c.b16 %v387, %v385
    %v418 = vpack.c.b16 %v390, %v388
    %v419 = vpack.c.b16 %v391, %v389
    %v420 = vpack.c.b16 %v394, %v392
    %v421 = vpack.c.b16 %v395, %v393
    %v422 = vpack.c.b16 %v398, %v396
    %v423 = vpack.c.b16 %v399, %v397
    %v424 = vpack.c.b16 %v402, %v400
    %v425 = vpack.c.b16 %v403, %v401
    %v426 = vpack.c.b16 %v406, %v404
    %v427 = vpack.c.b16 %v407, %v405
    %v428 = vpack.c.b16 %v410, %v408
    %v429 = vpack.c.b16 %v411, %v409
    %v430 = vpack.c.b16 %v414, %v412
    %v431 = vpack.c.b16 %v415, %v413
    %448 = vmatpush.bf16.msra.mxu0 %v430
    %449 = vmatpush.bf16.msra.mxu0 %v428
    %450 = vmatpush.bf16.msra.mxu0 %v426
    %451 = vmatpush.bf16.msra.mxu0 %v424
    %452 = vmatpush.bf16.msra.mxu0 %v422
    %453 = vmatpush.bf16.msra.mxu0 %v420
    %454 = vmatpush.bf16.msra.mxu0 %v418
    %455 = vmatpush.bf16.msra.mxu0 %v416
    %456 = vmatmul.bf16.gmra.mxu0 %v347
    %v457 = vpop.f32.mrf.mxu0
    %v458 = vadd.f32 0.0, %v457
    %v459 = vpop.f32.mrf.mxu0
    %v460 = vadd.f32 0.0, %v459
    %461 = vmatmul.bf16.gmra.mxu0 %v348
    %v462 = vpop.f32.mrf.mxu0
    %v463 = vadd.f32 0.0, %v462
    %v464 = vpop.f32.mrf.mxu0
    %v465 = vadd.f32 0.0, %v464
    %466 = vmatmul.bf16.gmra.mxu0 %v349
    %v467 = vpop.f32.mrf.mxu0
    %v468 = vadd.f32 0.0, %v467
    %v469 = vpop.f32.mrf.mxu0
    %v470 = vadd.f32 0.0, %v469
    %471 = vmatmul.bf16.gmra.mxu0 %v350
    %v472 = vpop.f32.mrf.mxu0
    %v473 = vadd.f32 0.0, %v472
    %v474 = vpop.f32.mrf.mxu0
    %v475 = vadd.f32 0.0, %v474
    %476 = vdwg.mxu0
    %477 = vmatpush.bf16.msra.mxu0 %v431
    %478 = vmatpush.bf16.msra.mxu0 %v429
    %479 = vmatpush.bf16.msra.mxu0 %v427
    %480 = vmatpush.bf16.msra.mxu0 %v425
    %481 = vmatpush.bf16.msra.mxu0 %v423
    %482 = vmatpush.bf16.msra.mxu0 %v421
    %483 = vmatpush.bf16.msra.mxu0 %v419
    %484 = vmatpush.bf16.msra.mxu0 %v417
    %485 = vmatmul.bf16.gmra.mxu0 %v347
    %v486 = vpop.f32.mrf.mxu0
    %v487 = vadd.f32 0.0, %v486
    %v488 = vpop.f32.mrf.mxu0
    %v489 = vadd.f32 0.0, %v488
    %490 = vmatmul.bf16.gmra.mxu0 %v348
    %v491 = vpop.f32.mrf.mxu0
    %v492 = vadd.f32 0.0, %v491
    %v493 = vpop.f32.mrf.mxu0
    %v494 = vadd.f32 0.0, %v493
    %495 = vmatmul.bf16.gmra.mxu0 %v349
    %v496 = vpop.f32.mrf.mxu0
    %v497 = vadd.f32 0.0, %v496
    %v498 = vpop.f32.mrf.mxu0
    %v499 = vadd.f32 0.0, %v498
    %500 = vmatmul.bf16.gmra.mxu0 %v350
    %v501 = vpop.f32.mrf.mxu0
    %v502 = vadd.f32 0.0, %v501
    %v503 = vpop.f32.mrf.mxu0
    %v504 = vadd.f32 0.0, %v503
    %505 = vdwg.mxu0
    %s506 = scalar_lea.vmem %s0, 32
    %v507 = vld [vmem:[%s506] sm:$0xf]
    %v508 = vld [vmem:[%s506 + $0x4] sm:$0xf]
    %v509 = vld [vmem:[%s506 + $0x8] sm:$0xf]
    %v510 = vld [vmem:[%s506 + $0xc] sm:$0xf]
    %v511 = vld [vmem:[%s506 + $0x10] sm:$0xf]
    %v512 = vld [vmem:[%s506 + $0x14] sm:$0xf]
    %v513 = vld [vmem:[%s506 + $0x18] sm:$0xf]
    %v514 = vld [vmem:[%s506 + $0x1c] sm:$0xf]
    %v515 = vpack.c.bf16 %v489, %v487
    %v516 = vpack.c.bf16 %v494, %v492
    %v517 = vpack.c.bf16 %v499, %v497
    %v518 = vpack.c.bf16 %v504, %v502
    %v527 = vunpack.c.l.b16 %v507
    %v528 = vunpack.c.l.b16 %v508
    %v529 = vunpack.c.l.b16 %v509
    %v530 = vunpack.c.l.b16 %v510
    %v531 = vunpack.c.l.b16 %v511
    %v532 = vunpack.c.l.b16 %v512
    %v533 = vunpack.c.l.b16 %v513
    %v534 = vunpack.c.l.b16 %v514
    %v535 = vpack.c.b16 %v528, %v527
    %v536 = vpack.c.b16 %v530, %v529
    %v537 = vpack.c.b16 %v532, %v531
    %v538 = vpack.c.b16 %v534, %v533
    %v540 = vsel %vm233, %v535, 0
    %v543 = vsel %vm233, %v536, 0
    %v546 = vsel %vm233, %v537, 0
    %v549 = vsel %vm233, %v538, 0
    %551 = vmatpush.bf16.msra.mxu0 0
    %552 = vmatpush.bf16.msra.mxu0 0
    %553 = vmatpush.bf16.msra.mxu0 0
    %554 = vmatpush.bf16.msra.mxu0 0
    %555 = vmatpush.bf16.msra.mxu0 %v518
    %556 = vmatpush.bf16.msra.mxu0 %v517
    %557 = vmatpush.bf16.msra.mxu0 %v516
    %558 = vmatpush.bf16.msra.mxu0 %v515
    %559 = vmatmul.bf16.gmra.mxu0 %v540
    %v560 = vpop.f32.mrf.mxu0
    %v561 = vadd.f32 0.0, %v560
    %v562 = vpop.f32.mrf.mxu0
    %v563 = vadd.f32 0.0, %v562
    %564 = vmatmul.bf16.gmra.mxu0 %v543
    %v565 = vpop.f32.mrf.mxu0
    %v566 = vadd.f32 0.0, %v565
    %v567 = vpop.f32.mrf.mxu0
    %v568 = vadd.f32 0.0, %v567
    %569 = vmatmul.bf16.gmra.mxu0 %v546
    %v570 = vpop.f32.mrf.mxu0
    %v571 = vadd.f32 0.0, %v570
    %v572 = vpop.f32.mrf.mxu0
    %v573 = vadd.f32 0.0, %v572
    %574 = vmatmul.bf16.gmra.mxu0 %v549
    %v575 = vpop.f32.mrf.mxu0
    %v576 = vadd.f32 0.0, %v575
    %v577 = vpop.f32.mrf.mxu0
    %v578 = vadd.f32 0.0, %v577
    %579 = vdwg.mxu0
    %s580 = scalar_lea.vmem %s1, 64
    %v581 = vld [vmem:[%s580] sm:$0xff]
    %v582 = vld [vmem:[%s580 + $0x8] sm:$0xff]
    %v583 = vld [vmem:[%s580 + $0x10] sm:$0xff]
    %v584 = vld [vmem:[%s580 + $0x18] sm:$0xff]
    %v585 = vld [vmem:[%s580 + $0x20] sm:$0xff]
    %v586 = vld [vmem:[%s580 + $0x28] sm:$0xff]
    %v587 = vld [vmem:[%s580 + $0x30] sm:$0xff]
    %v588 = vld [vmem:[%s580 + $0x38] sm:$0xff]
    %590 = vset.pattern.permute.xlu0 0
    %591 = vperm.xlu0 %590, %v581
    %v592 = vpop.permute.xlu0 %591
    %595 = vset.pattern.permute.xlu0 0
    %596 = vperm.xlu0 %595, %v582
    %v597 = vpop.permute.xlu0 %596
    %600 = vset.pattern.permute.xlu0 0
    %601 = vperm.xlu0 %600, %v583
    %v602 = vpop.permute.xlu0 %601
    %605 = vset.pattern.permute.xlu0 0
    %606 = vperm.xlu0 %605, %v584
    %v607 = vpop.permute.xlu0 %606
    %610 = vset.pattern.permute.xlu0 0
    %611 = vperm.xlu0 %610, %v585
    %v612 = vpop.permute.xlu0 %611
    %615 = vset.pattern.permute.xlu0 0
    %616 = vperm.xlu0 %615, %v586
    %v617 = vpop.permute.xlu0 %616
    %620 = vset.pattern.permute.xlu0 0
    %621 = vperm.xlu0 %620, %v587
    %v622 = vpop.permute.xlu0 %621
    %625 = vset.pattern.permute.xlu0 0
    %626 = vperm.xlu0 %625, %v588
    %v627 = vpop.permute.xlu0 %626
    %v629 = vmul.f32 %v592, %v561
    %v630 = vmul.f32 %v597, %v563
    %v631 = vmul.f32 %v602, %v566
    %v632 = vmul.f32 %v607, %v568
    %v633 = vmul.f32 %v612, %v571
    %v634 = vmul.f32 %v617, %v573
    %v635 = vmul.f32 %v622, %v576
    %v636 = vmul.f32 %v627, %v578
    %v637 = vadd.f32 %v458, %v629
    %v638 = vadd.f32 %v460, %v630
    %v639 = vadd.f32 %v463, %v631
    %v640 = vadd.f32 %v465, %v632
    %v641 = vadd.f32 %v468, %v633
    %v642 = vadd.f32 %v470, %v634
    %v643 = vadd.f32 %v473, %v635
    %v644 = vadd.f32 %v475, %v636
    %v645 = vmax.f32 %v637, 0.0
    %v646 = vmax.f32 %v638, 0.0
    %v647 = vmax.f32 %v639, 0.0
    %v648 = vmax.f32 %v640, 0.0
    %v649 = vmax.f32 %v641, 0.0
    %v650 = vmax.f32 %v642, 0.0
    %v651 = vmax.f32 %v643, 0.0
    %v652 = vmax.f32 %v644, 0.0
    %v653 = vpack.c.bf16 %v646, %v645
    %v654 = vpack.c.bf16 %v648, %v647
    %v655 = vpack.c.bf16 %v650, %v649
    %v656 = vpack.c.bf16 %v652, %v651
    %s657 = scalar_lea.vmem [#allocation2], 256
    %v658 = vld [vmem:[%s657] sm:$0xff]
    %v659 = vld [vmem:[%s657 + $0x8] sm:$0xff]
    %v660 = vld [vmem:[%s657 + $0x10] sm:$0xff]
    %v661 = vld [vmem:[%s657 + $0x18] sm:$0xff]
    %v662 = vld [vmem:[%s657 + $0x20] sm:$0xff]
    %v663 = vld [vmem:[%s657 + $0x28] sm:$0xff]
    %v664 = vld [vmem:[%s657 + $0x30] sm:$0xff]
    %v665 = vld [vmem:[%s657 + $0x38] sm:$0xff]
    %v666 = vld [vmem:[%s657 + $0x40] sm:$0xff]
    %v667 = vld [vmem:[%s657 + $0x48] sm:$0xff]
    %v668 = vld [vmem:[%s657 + $0x50] sm:$0xff]
    %v669 = vld [vmem:[%s657 + $0x58] sm:$0xff]
    %v670 = vld [vmem:[%s657 + $0x60] sm:$0xff]
    %v671 = vld [vmem:[%s657 + $0x68] sm:$0xff]
    %v672 = vld [vmem:[%s657 + $0x70] sm:$0xff]
    %v673 = vld [vmem:[%s657 + $0x78] sm:$0xff]
    %v690 = vunpack.c.l.b16 %v658
    %v691 = vunpack.c.h.b16 %v658
    %v692 = vunpack.c.l.b16 %v659
    %v693 = vunpack.c.h.b16 %v659
    %v694 = vunpack.c.l.b16 %v660
    %v695 = vunpack.c.h.b16 %v660
    %v696 = vunpack.c.l.b16 %v661
    %v697 = vunpack.c.h.b16 %v661
    %v698 = vunpack.c.l.b16 %v662
    %v699 = vunpack.c.h.b16 %v662
    %v700 = vunpack.c.l.b16 %v663
    %v701 = vunpack.c.h.b16 %v663
    %v702 = vunpack.c.l.b16 %v664
    %v703 = vunpack.c.h.b16 %v664
    %v704 = vunpack.c.l.b16 %v665
    %v705 = vunpack.c.h.b16 %v665
    %v706 = vunpack.c.l.b16 %v666
    %v707 = vunpack.c.h.b16 %v666
    %v708 = vunpack.c.l.b16 %v667
    %v709 = vunpack.c.h.b16 %v667
    %v710 = vunpack.c.l.b16 %v668
    %v711 = vunpack.c.h.b16 %v668
    %v712 = vunpack.c.l.b16 %v669
    %v713 = vunpack.c.h.b16 %v669
    %v714 = vunpack.c.l.b16 %v670
    %v715 = vunpack.c.h.b16 %v670
    %v716 = vunpack.c.l.b16 %v671
    %v717 = vunpack.c.h.b16 %v671
    %v718 = vunpack.c.l.b16 %v672
    %v719 = vunpack.c.h.b16 %v672
    %v720 = vunpack.c.l.b16 %v673
    %v721 = vunpack.c.h.b16 %v673
    %v722 = vpack.c.b16 %v692, %v690
    %v723 = vpack.c.b16 %v693, %v691
    %v724 = vpack.c.b16 %v696, %v694
    %v725 = vpack.c.b16 %v697, %v695
    %v726 = vpack.c.b16 %v700, %v698
    %v727 = vpack.c.b16 %v701, %v699
    %v728 = vpack.c.b16 %v704, %v702
    %v729 = vpack.c.b16 %v705, %v703
    %v730 = vpack.c.b16 %v708, %v706
    %v731 = vpack.c.b16 %v709, %v707
    %v732 = vpack.c.b16 %v712, %v710
    %v733 = vpack.c.b16 %v713, %v711
    %v734 = vpack.c.b16 %v716, %v714
    %v735 = vpack.c.b16 %v717, %v715
    %v736 = vpack.c.b16 %v720, %v718
    %v737 = vpack.c.b16 %v721, %v719
    %754 = vmatpush.bf16.msra.mxu0 %v736
    %755 = vmatpush.bf16.msra.mxu0 %v734
    %756 = vmatpush.bf16.msra.mxu0 %v732
    %757 = vmatpush.bf16.msra.mxu0 %v730
    %758 = vmatpush.bf16.msra.mxu0 %v728
    %759 = vmatpush.bf16.msra.mxu0 %v726
    %760 = vmatpush.bf16.msra.mxu0 %v724
    %761 = vmatpush.bf16.msra.mxu0 %v722
    %762 = vmatmul.bf16.gmra.mxu0 %v653
    %v763 = vpop.f32.mrf.mxu0
    %v764 = vadd.f32 0.0, %v763
    %v765 = vpop.f32.mrf.mxu0
    %v766 = vadd.f32 0.0, %v765
    %767 = vmatmul.bf16.gmra.mxu0 %v654
    %v768 = vpop.f32.mrf.mxu0
    %v769 = vadd.f32 0.0, %v768
    %v770 = vpop.f32.mrf.mxu0
    %v771 = vadd.f32 0.0, %v770
    %772 = vmatmul.bf16.gmra.mxu0 %v655
    %v773 = vpop.f32.mrf.mxu0
    %v774 = vadd.f32 0.0, %v773
    %v775 = vpop.f32.mrf.mxu0
    %v776 = vadd.f32 0.0, %v775
    %777 = vmatmul.bf16.gmra.mxu0 %v656
    %v778 = vpop.f32.mrf.mxu0
    %v779 = vadd.f32 0.0, %v778
    %v780 = vpop.f32.mrf.mxu0
    %v781 = vadd.f32 0.0, %v780
    %782 = vdwg.mxu0
    %783 = vmatpush.bf16.msra.mxu0 %v737
    %784 = vmatpush.bf16.msra.mxu0 %v735
    %785 = vmatpush.bf16.msra.mxu0 %v733
    %786 = vmatpush.bf16.msra.mxu0 %v731
    %787 = vmatpush.bf16.msra.mxu0 %v729
    %788 = vmatpush.bf16.msra.mxu0 %v727
    %789 = vmatpush.bf16.msra.mxu0 %v725
    %790 = vmatpush.bf16.msra.mxu0 %v723
    %791 = vmatmul.bf16.gmra.mxu0 %v653
    %v792 = vpop.f32.mrf.mxu0
    %v793 = vadd.f32 0.0, %v792
    %v794 = vpop.f32.mrf.mxu0
    %v795 = vadd.f32 0.0, %v794
    %796 = vmatmul.bf16.gmra.mxu0 %v654
    %v797 = vpop.f32.mrf.mxu0
    %v798 = vadd.f32 0.0, %v797
    %v799 = vpop.f32.mrf.mxu0
    %v800 = vadd.f32 0.0, %v799
    %801 = vmatmul.bf16.gmra.mxu0 %v655
    %v802 = vpop.f32.mrf.mxu0
    %v803 = vadd.f32 0.0, %v802
    %v804 = vpop.f32.mrf.mxu0
    %v805 = vadd.f32 0.0, %v804
    %806 = vmatmul.bf16.gmra.mxu0 %v656
    %v807 = vpop.f32.mrf.mxu0
    %v808 = vadd.f32 0.0, %v807
    %v809 = vpop.f32.mrf.mxu0
    %v810 = vadd.f32 0.0, %v809
    %811 = vdwg.mxu0
    %s812 = scalar_lea.vmem %s0, 64
    %v813 = vld [vmem:[%s812] sm:$0xf]
    %v814 = vld [vmem:[%s812 + $0x4] sm:$0xf]
    %v815 = vld [vmem:[%s812 + $0x8] sm:$0xf]
    %v816 = vld [vmem:[%s812 + $0xc] sm:$0xf]
    %v817 = vld [vmem:[%s812 + $0x10] sm:$0xf]
    %v818 = vld [vmem:[%s812 + $0x14] sm:$0xf]
    %v819 = vld [vmem:[%s812 + $0x18] sm:$0xf]
    %v820 = vld [vmem:[%s812 + $0x1c] sm:$0xf]
    %v821 = vpack.c.bf16 %v795, %v793
    %v822 = vpack.c.bf16 %v800, %v798
    %v823 = vpack.c.bf16 %v805, %v803
    %v824 = vpack.c.bf16 %v810, %v808
    %v833 = vunpack.c.l.b16 %v813
    %v834 = vunpack.c.l.b16 %v814
    %v835 = vunpack.c.l.b16 %v815
    %v836 = vunpack.c.l.b16 %v816
    %v837 = vunpack.c.l.b16 %v817
    %v838 = vunpack.c.l.b16 %v818
    %v839 = vunpack.c.l.b16 %v819
    %v840 = vunpack.c.l.b16 %v820
    %v841 = vpack.c.b16 %v834, %v833
    %v842 = vpack.c.b16 %v836, %v835
    %v843 = vpack.c.b16 %v838, %v837
    %v844 = vpack.c.b16 %v840, %v839
    %v846 = vsel %vm233, %v841, 0
    %v849 = vsel %vm233, %v842, 0
    %v852 = vsel %vm233, %v843, 0
    %v855 = vsel %vm233, %v844, 0
    %857 = vmatpush.bf16.msra.mxu0 0
    %858 = vmatpush.bf16.msra.mxu0 0
    %859 = vmatpush.bf16.msra.mxu0 0
    %860 = vmatpush.bf16.msra.mxu0 0
    %861 = vmatpush.bf16.msra.mxu0 %v824
    %862 = vmatpush.bf16.msra.mxu0 %v823
    %863 = vmatpush.bf16.msra.mxu0 %v822
    %864 = vmatpush.bf16.msra.mxu0 %v821
    %865 = vmatmul.bf16.gmra.mxu0 %v846
    %v866 = vpop.f32.mrf.mxu0
    %v867 = vadd.f32 0.0, %v866
    %v868 = vpop.f32.mrf.mxu0
    %v869 = vadd.f32 0.0, %v868
    %870 = vmatmul.bf16.gmra.mxu0 %v849
    %v871 = vpop.f32.mrf.mxu0
    %v872 = vadd.f32 0.0, %v871
    %v873 = vpop.f32.mrf.mxu0
    %v874 = vadd.f32 0.0, %v873
    %875 = vmatmul.bf16.gmra.mxu0 %v852
    %v876 = vpop.f32.mrf.mxu0
    %v877 = vadd.f32 0.0, %v876
    %v878 = vpop.f32.mrf.mxu0
    %v879 = vadd.f32 0.0, %v878
    %880 = vmatmul.bf16.gmra.mxu0 %v855
    %v881 = vpop.f32.mrf.mxu0
    %v882 = vadd.f32 0.0, %v881
    %v883 = vpop.f32.mrf.mxu0
    %v884 = vadd.f32 0.0, %v883
    %885 = vdwg.mxu0
    %s886 = scalar_lea.vmem %s1, 128
    %v887 = vld [vmem:[%s886] sm:$0xff]
    %v888 = vld [vmem:[%s886 + $0x8] sm:$0xff]
    %v889 = vld [vmem:[%s886 + $0x10] sm:$0xff]
    %v890 = vld [vmem:[%s886 + $0x18] sm:$0xff]
    %v891 = vld [vmem:[%s886 + $0x20] sm:$0xff]
    %v892 = vld [vmem:[%s886 + $0x28] sm:$0xff]
    %v893 = vld [vmem:[%s886 + $0x30] sm:$0xff]
    %v894 = vld [vmem:[%s886 + $0x38] sm:$0xff]
    %896 = vset.pattern.permute.xlu0 0
    %897 = vperm.xlu0 %896, %v887
    %v898 = vpop.permute.xlu0 %897
    %901 = vset.pattern.permute.xlu0 0
    %902 = vperm.xlu0 %901, %v888
    %v903 = vpop.permute.xlu0 %902
    %906 = vset.pattern.permute.xlu0 0
    %907 = vperm.xlu0 %906, %v889
    %v908 = vpop.permute.xlu0 %907
    %911 = vset.pattern.permute.xlu0 0
    %912 = vperm.xlu0 %911, %v890
    %v913 = vpop.permute.xlu0 %912
    %916 = vset.pattern.permute.xlu0 0
    %917 = vperm.xlu0 %916, %v891
    %v918 = vpop.permute.xlu0 %917
    %921 = vset.pattern.permute.xlu0 0
    %922 = vperm.xlu0 %921, %v892
    %v923 = vpop.permute.xlu0 %922
    %926 = vset.pattern.permute.xlu0 0
    %927 = vperm.xlu0 %926, %v893
    %v928 = vpop.permute.xlu0 %927
    %931 = vset.pattern.permute.xlu0 0
    %932 = vperm.xlu0 %931, %v894
    %v933 = vpop.permute.xlu0 %932
    %v935 = vmul.f32 %v898, %v867
    %v936 = vmul.f32 %v903, %v869
    %v937 = vmul.f32 %v908, %v872
    %v938 = vmul.f32 %v913, %v874
    %v939 = vmul.f32 %v918, %v877
    %v940 = vmul.f32 %v923, %v879
    %v941 = vmul.f32 %v928, %v882
    %v942 = vmul.f32 %v933, %v884
    %v943 = vadd.f32 %v764, %v935
    %v944 = vadd.f32 %v766, %v936
    %v945 = vadd.f32 %v769, %v937
    %v946 = vadd.f32 %v771, %v938
    %v947 = vadd.f32 %v774, %v939
    %v948 = vadd.f32 %v776, %v940
    %v949 = vadd.f32 %v779, %v941
    %v950 = vadd.f32 %v781, %v942
    %951 = vst [vmem:[#allocation5] sm:$0xff] %v943
    %952 = vst [vmem:[#allocation5 + $0x8] sm:$0xff] %v944
    %953 = vst [vmem:[#allocation5 + $0x10] sm:$0xff] %v945
    %954 = vst [vmem:[#allocation5 + $0x18] sm:$0xff] %v946
    %955 = vst [vmem:[#allocation5 + $0x20] sm:$0xff] %v947
    %956 = vst [vmem:[#allocation5 + $0x28] sm:$0xff] %v948
    %957 = vst [vmem:[#allocation5 + $0x30] sm:$0xff] %v949
    %958 = vst [vmem:[#allocation5 + $0x38] sm:$0xff] %v950
    // Predicated region
    $region22: #{tpu_custom_call.1} parent=1 // pred_check
      _
    $region23: #{tpu_custom_call.1} parent=1 // pred_check_branch
      %960 = sbr.rel (0) target = $region25
    $region24: #{tpu_custom_call.1} parent=1 // pred_region
      %962 = vsyncadd [#allocation4], 0
      %s963 = sshll.u32 [#allocation5], 4
      %s964 = int_to_ptr.vmem [resolvable:$true] %s963
      %s965 = sshll.u32 %s4, 4
      %s966 = int_to_ptr.hbm [resolvable:$true] %s965
      %971 = dma.vmem_to_hbm [thread:$0]  %s964, 1024, %s966, [#allocation4], 128, 128, 8
    $region25: #{tpu_custom_call.1} parent=1 // pred_fallthru
      _
    // Predicated region
    $region26: #{tpu_custom_call.1} parent=1 // pred_check
      _
    $region27: #{tpu_custom_call.1} parent=1 // pred_check_branch
      %973 = sbr.rel (0) target = $region29
    $region28: #{tpu_custom_call.1} parent=1 // pred_region
      %975 = dma.done [#allocation4], 1024
    $region29: #{tpu_custom_call.1} parent=1 // pred_fallthru
      _
    %976 = vsyncpa [#allocation3], 1
    %977 = vsyncpa [#allocation4], 1

</llo_original>
